<compile_context>
chip_gen: v7x
topology: tpu7x:2x2x1
jax: 0.10.0
libtpu: 0.0.40
codegen_flags: <defaults>
</compile_context>

<pallas_src>
import functools

import jax
import jax.numpy as jnp
from jax.experimental import pallas as pl
from jax.experimental.pallas import tpu as pltpu


def _ceil_to(a: int, m: int) -> int:
    return (a + m - 1) // m * m


def _num_tensorcores() -> int:
    """Best-effort TensorCore count of the local device (default 1)."""
    try:
        info = pltpu.get_tpu_info()
        for name in ("num_cores", "core_count", "num_tensorcores"):
            v = getattr(info, name, None)
            if v:
                return max(1, int(v))
    except Exception:
        pass
    try:
        kind = (getattr(jax.devices()[0], "device_kind", "") or "").lower()
        # Dual-TensorCore / megacore parts; v5e and v6e expose one TC per device.
        if any(tag in kind for tag in ("v7", "v5p", "v4")):
            return 2
    except Exception:
        pass
    return 1


def _normalize_kernel(x_ref, o_ref, *, power: float):
    # Pass 1: per-row p-norm. Upcast to f32 for the reduce (v5e has no bf16 VPU).
    xf = x_ref[...].astype(jnp.float32)

    p_is_int = float(power) == int(power)
    if power == 2:
        norm = jnp.sqrt(jnp.sum(xf * xf, axis=1, keepdims=True))
    elif power == 1:
        # Literal port of x.pow(1).sum(1): no abs(), matching the PyTorch module.
        norm = jnp.sum(xf, axis=1, keepdims=True)
    elif p_is_int and 0 < int(power) <= 8:
        # Small integer powers: repeated VPU multiplies; the 1/p root is per-row only.
        xp = xf
        for _ in range(int(power) - 1):
            xp = xp * xf
        norm = jnp.power(jnp.sum(xp, axis=1, keepdims=True), 1.0 / power)
    else:
        # Generic path (matches x.pow(p) literally, incl. no abs()).
        norm = jnp.power(jnp.sum(jnp.power(xf, power), axis=1, keepdims=True),
                         1.0 / power)

    # Per-row reciprocal on the EUP slot (only tm values per block). approx=True is
    # not bit-identical to the reference's divide; error is ~1e-3 relative at most.
    inv = pl.reciprocal(norm + 1e-7, approx=True)

    # Pass 2: re-read/upcast the (narrow-dtype) input buffer instead of keeping the
    # f32 upcast live across the reduce -- VMEM-only traffic, avoids a spilled temp.
    o_ref[...] = (x_ref[...].astype(jnp.float32) * inv).astype(o_ref.dtype)


def normalize(x: jax.Array, power: float = 2, *,
              target_block_bytes: int = 2 * 1024 * 1024,
              vmem_limit_bytes: int = 32 * 1024 * 1024) -> jax.Array:
    """L^p normalization over axis 1 of a (N, D) array (PyTorch Normalize.forward)."""
    assert x.ndim == 2, "kernel expects (N, D) features (PyTorch dim=1 reduce)"
    n, d = x.shape
    dtype = x.dtype
    itemsize = jnp.dtype(dtype).itemsize

    # Sublane packing of the input dtype: 8 rows for 4-byte, 16 for 2-byte, 32 for 1-byte.
    row_align = max(8, 32 // max(itemsize, 1))

    # ---- row tile sized by *input dtype* bytes per pipelined DMA buffer.
    tm = max(row_align,
             (target_block_bytes // max(d * itemsize, 1)) // row_align * row_align)
    tm = min(tm, _ceil_to(n, row_align))

    # ---- cap so the working set (2x in + 2x out dtype buffers + ~2 blocks of f32
    #      compute temporaries) stays under ~3/4 of the scoped-VMEM limit.
    per_row_bytes = d * (4 * itemsize + 2 * 4)
    tm_cap = ((vmem_limit_bytes * 3 // 4) // per_row_bytes) // row_align * row_align
    tm = min(tm, max(row_align, tm_cap))
    # TODO(synk): add a D-tiled fallback (second 'arbitrary' grid axis with a per-row
    # partial-sum VMEM accumulator and lane masking) for very wide D where even a
    # row_align-row full-D block overflows VMEM; not needed for mscl.py feature widths.

    # ---- grid step count: balance across TensorCores (v7x) without adding useless
    #      steps on single-TC parts.
    steps = int(pl.cdiv(n, tm))
    cores = _num_tensorcores()
    round_to = cores if cores > 1 else 2
    if steps == 1:
        if cores > 1 and n > row_align:
            steps = cores
    elif steps % round_to:
        steps = _ceil_to(steps, round_to)
    if steps > 1:
        tm = max(row_align, _ceil_to(-(-n // steps), row_align))
        steps = int(pl.cdiv(n, tm))

    # ---- advisory cost estimate from the true (unpadded) shapes / active branch.
    p_is_int = float(power) == int(power)
    if power == 2:
        flops, trans = 3 * n * d, 2 * n
    elif power == 1:
        flops, trans = 2 * n * d, 2 * n
    elif p_is_int and 0 < int(power) <= 8:
        flops, trans = (int(power) + 1) * n * d, 2 * n
    else:
        flops, trans = 2 * n * d, n * d + 2 * n

    kernel = functools.partial(_normalize_kernel, power=power)

    out = pl.pallas_call(
        kernel,
        out_shape=jax.ShapeDtypeStruct((n, d), dtype),
        grid_spec=pltpu.PrefetchScalarGridSpec(
            num_scalar_prefetch=0,
            grid=(steps,),
            # Last block dim = full D (legal even when D % 128 != 0); ragged last
            # row block handled by Pallas (rows are independent; OOB rows dropped).
            in_specs=[pl.BlockSpec((tm, d), lambda i: (i, 0))],
            out_specs=pl.BlockSpec((tm, d), lambda i: (i, 0)),
        ),
        compiler_params=pltpu.CompilerParams(
            dimension_semantics=("parallel",),
            vmem_limit_bytes=vmem_limit_bytes),
        cost_estimate=pl.CostEstimate(
            flops=flops,
            transcendentals=trans,
            bytes_accessed=2 * n * d * itemsize),
    )(x)
    return out


def normalize_ref(x: jax.Array, power: float = 2) -> jax.Array:
    """Pure-JAX reference mirroring the PyTorch forward (computed in f32)."""
    xf = x.astype(jnp.float32)
    norm = jnp.power(jnp.sum(jnp.power(xf, power), axis=1, keepdims=True),
                     1.0 / power)
    return (xf / (norm + 1e-7)).astype(x.dtype)


if __name__ == "__main__":
    # Small feature batch consistent with mscl.py usage: (batch, feat_dim).
    x = jax.random.normal(jax.random.PRNGKey(0), (8, 32), dtype=jnp.float32)
    out = jax.block_until_ready(normalize(x, power=2))
    ref = normalize_ref(x, power=2)
    assert out.shape == x.shape and out.dtype == x.dtype
    # Tolerance covers the approx (EUP) per-row reciprocal (<~1e-3 relative).
    assert jnp.allclose(out, ref, atol=5e-3, rtol=5e-3)

    # Ragged case: N not a tile multiple, D not a multiple of 128 -- handled fully
    # in-kernel (no wrapper pad / slice).
    x2 = jax.random.normal(jax.random.PRNGKey(1), (60, 100), dtype=jnp.float32)
    out2 = jax.block_until_ready(normalize(x2, power=2))
    ref2 = normalize_ref(x2, power=2)
    assert out2.shape == x2.shape and out2.dtype == x2.dtype
    assert jnp.allclose(out2, ref2, atol=5e-3, rtol=5e-3)

    # Sub-32-bit input: exercises itemsize-based tiling and the re-read store path.
    x3 = jax.random.normal(jax.random.PRNGKey(2), (48, 96), dtype=jnp.bfloat16)
    out3 = jax.block_until_ready(normalize(x3, power=2))
    ref3 = normalize_ref(x3, power=2)
    assert out3.shape == x3.shape and out3.dtype == x3.dtype
    assert jnp.allclose(out3.astype(jnp.float32), ref3.astype(jnp.float32),
                        atol=2e-2, rtol=2e-2)

    print("KERNEL_OK")
</pallas_src>

<mosaic_0001>
module attributes {stable_mosaic.version = 11 : i64} {
  func.func @_normalize_kernel(%arg0: i32, %arg1: memref<8x32xf32, #tpu.memory_space<vmem>>, %arg2: memref<8x32xf32, #tpu.memory_space<vmem>>) attributes {dimension_semantics = [#tpu.dimension_semantics<parallel>], iteration_bounds = array<i64: 1>, scalar_prefetch = 0 : i64, scratch_operands = 0 : i64, tpu.core_type = #tpu.core_type<tc>, window_params = [{transform_indices = @transform_0, window_bounds = array<i64: 8, 32>}, {transform_indices = @transform_1, window_bounds = array<i64: 8, 32>}]} {
    %c0 = arith.constant 0 : index
    %c0_0 = arith.constant 0 : index
    %0 = vector.load %arg1[%c0, %c0_0] : memref<8x32xf32, #tpu.memory_space<vmem>>, vector<8x32xf32>
    %1 = arith.mulf %0, %0 : vector<8x32xf32>
    %cst = arith.constant dense<0.000000e+00> : vector<8xf32>
    %2 = vector.multi_reduction <add>, %1, %cst [1] : vector<8x32xf32> to vector<8xf32>
    %3 = vector.shape_cast %2 : vector<8xf32> to vector<8x1xf32>
    %4 = math.sqrt %3 : vector<8x1xf32>
    %cst_1 = arith.constant 1.000000e-07 : f32
    %5 = vector.broadcast %cst_1 : f32 to vector<8x1xf32>
    %6 = arith.addf %4, %5 : vector<8x1xf32>
    %7 = tpu.reciprocal %6 {approx = true} : vector<8x1xf32> -> vector<8x1xf32>
    %c0_2 = arith.constant 0 : index
    %c0_3 = arith.constant 0 : index
    %8 = vector.load %arg1[%c0_2, %c0_3] : memref<8x32xf32, #tpu.memory_space<vmem>>, vector<8x32xf32>
    %9 = vector.broadcast %7 : vector<8x1xf32> to vector<8x32xf32>
    %10 = arith.mulf %8, %9 : vector<8x32xf32>
    %c0_4 = arith.constant 0 : index
    %c0_5 = arith.constant 0 : index
    %11 = vector.load %arg2[%c0_4, %c0_5] : memref<8x32xf32, #tpu.memory_space<vmem>>, vector<8x32xf32>
    tpu.vector_store %arg2[%c0_4, %c0_5], %10 {strides = array<i32>} : memref<8x32xf32, #tpu.memory_space<vmem>>, vector<8x32xf32>,
    return
  }
  func.func @transform_0(%arg0: i32) -> (i32, i32) {
    %c0_i32 = arith.constant 0 : i32
    %c0_i32_0 = arith.constant 0 : i32
    return %arg0, %c0_i32 : i32, i32
  }
  func.func @transform_1(%arg0: i32) -> (i32, i32) {
    %c0_i32 = arith.constant 0 : i32
    %c0_i32_0 = arith.constant 0 : i32
    return %arg0, %c0_i32 : i32, i32
  }
}

</mosaic_0001>

<llo_original>
// kernel: tpu_custom_call.1
$region0: #{tpu_custom_call.1}
  #allocation0 [shape = 'u32[]', space=smem, size = 0x4, offset = 0x4, fixed_abs, tag = 'smem constant byte address 0x4 - core index']
  #allocation1 [shape = 'u32[144,128]{1,0:T(1,128)}', space=vmem, size = 0x12000, scoped, tag = 'internal scratch']
  %s0 = inlined_call_operand.hbm [shape: f32[8,32], index: 0, kind: input, shape index: {}]
  %s1 = inlined_call_operand.hbm [shape: f32[8,32], index: 1, kind: output, shape index: {}]
  %s2 = sld [smem:[#allocation0]]
  $region18: #{tpu_custom_call.1} parent=0
    _
  %s4 = ssub.s32 1, %s2
  %s5 = scalar_select 0, %s4, %s2
  $region1: #{tpu_custom_call.1} parent=0
    #allocation2 [shape = 'u8[4096]{0}', space=vmem, size = 0x1000, scoped, tag = 'input window, operand 0, single buffered']
    #allocation3 [shape = 's32[1]{0}', space=sflag, size = 0x4, scoped, tag = 'scoped memory for tpu_custom_call.1']
    #allocation4 [shape = 's32[1]{0}', space=sflag, size = 0x4, scoped, tag = 'scoped memory for tpu_custom_call.1']
    #allocation5 [shape = 'u8[4096]{0}', space=vmem, size = 0x1000, scoped, tag = 'output window, operand 0, single buffered']
    %6 = vsyncpa [#allocation3], 0
    %7 = vsyncpa [#allocation4], 0
    // Predicated region
    $region2: #{tpu_custom_call.1} parent=1 // pred_check
      _
    $region3: #{tpu_custom_call.1} parent=1 // pred_check_branch
      %9 = sbr.rel (0) target = $region5
    $region4: #{tpu_custom_call.1} parent=1 // pred_region
      %s11 = ssub.s32 128, 128
      %12 = vsyncadd [#allocation3], %s11
      %s14 = sshll.u32 [#allocation2], 4
      %s15 = int_to_ptr.vmem [resolvable:$true] %s14
      %17 = dma.hbm_to_vmem [thread:$0]  %s0, 128, %s15, [#allocation3]
    $region5: #{tpu_custom_call.1} parent=1 // pred_fallthru
      _
    // Predicated region
    $region6: #{tpu_custom_call.1} parent=1 // pred_check
      _
    $region7: #{tpu_custom_call.1} parent=1 // pred_check_branch
      %19 = sbr.rel (0) target = $region9
    $region8: #{tpu_custom_call.1} parent=1 // pred_region
      %20 = dma.done [#allocation3], 128
    $region9: #{tpu_custom_call.1} parent=1 // pred_fallthru
      _
    %v21 = vld [vmem:[#allocation2] sm:$0xff]
    %v22 = vmul.f32 %v21, %v21
    %vm23 = vcmask 261120
    %v24 = vsel %vm23, %v22, 0.0
    %25 = vadd.xlane.f32.xlu0 %v24
    %v26 = vpop.xlane.xlu0 %25
    %v27 = vrsqrt.pop %v26
    %v28 = vmul.f32 %v26, %v27
    %vm29 = vcmp.eq.f32.partialorder %v26, inf
    %v30 = vsel %vm29, %v26, %v28
    %vm31 = vcmp.eq.f32.partialorder %v26, 0.0
    %v32 = vand.u32 %v26, 2147483648
    %v33 = vsel %vm31, %v32, %v30
    %v34 = vadd.f32 %v33, 1e-07
    %v35 = vrcp.pop %v34
    %v36 = vmul.f32 %v21, %v35
    %37 = vst.msk [vmem:[#allocation5] sm:$0xff] %vm23, %v36
    // Predicated region
    $region10: #{tpu_custom_call.1} parent=1 // pred_check
      _
    $region11: #{tpu_custom_call.1} parent=1 // pred_check_branch
      %39 = sbr.rel (0) target = $region13
    $region12: #{tpu_custom_call.1} parent=1 // pred_region
      %s41 = ssub.s32 128, 128
      %42 = vsyncadd [#allocation4], %s41
      %s44 = sshll.u32 [#allocation5], 4
      %s45 = int_to_ptr.vmem [resolvable:$true] %s44
      %47 = dma.vmem_to_hbm [thread:$0]  %s45, 128, %s1, [#allocation4]
    $region13: #{tpu_custom_call.1} parent=1 // pred_fallthru
      _
    // Predicated region
    $region14: #{tpu_custom_call.1} parent=1 // pred_check
      _
    $region15: #{tpu_custom_call.1} parent=1 // pred_check_branch
      %49 = sbr.rel (0) target = $region17
    $region16: #{tpu_custom_call.1} parent=1 // pred_region
      %50 = dma.done [#allocation4], 128
    $region17: #{tpu_custom_call.1} parent=1 // pred_fallthru
      _
    %51 = vsyncpa [#allocation3], 1
    %52 = vsyncpa [#allocation4], 1

</llo_original>
